<compile_context>
chip_gen: v5e
topology: v5e:2x2
jax: 0.10.0
libtpu: 0.0.40
codegen_flags: <defaults>
</compile_context>

<pallas_src>
import jax
import jax.numpy as jnp
from jax.experimental import pallas as pl
from jax.experimental.pallas import tpu as pltpu


# ----------------------------- kernels ---------------------------------------


def _se_sum_kernel(x_ref, sums_ref):
    """Pass 1: accumulate per-(b, c) spatial sums in f32.

    x_ref:    (1, C, hw_tile)   current batch row / spatial tile
    sums_ref: (1, 1, C) f32     accumulator, resident across the hw-tile axis
    """
    @pl.when(pl.program_id(1) == 0)
    def _():
        sums_ref[...] = jnp.zeros_like(sums_ref)

    # f32 accumulation of the spatial reduction (no full f32 copy of the tile).
    part = jnp.sum(x_ref[...], axis=-1, dtype=jnp.float32)      # (1, C)
    sums_ref[...] += part[:, None, :]                            # (1, 1, C)


def _se_scale_kernel(x_ref, gate_ref, o_ref):
    """Pass 2: pure load-multiply-store stream in the native dtype.

    x_ref:    (1, C, hw_tile)
    gate_ref: (1, C, 1) f32     per-(b, c) sigmoid gate
    o_ref:    (1, C, hw_tile)
    """
    o_ref[...] = x_ref[...] * gate_ref[...].astype(x_ref.dtype)


# ----------------------------- wrapper ----------------------------------------


def _pick_hw_tile(hw, c, itemsize, target_tile_bytes=4 << 20, max_lanes=2048):
    """Largest multiple-of-128 divisor of hw, capped by lane count and a
    per-tile VMEM budget (keeps double-buffered in+out tiles well inside the
    v7x 64 MiB / v5e 16 MiB-scoped-default VMEM)."""
    if hw % 128 != 0:
        return hw  # full-extent block is always legal
    cap = max(128, min(max_lanes, target_tile_bytes // max(1, c * itemsize)))
    cap = max(128, (cap // 128) * 128)
    t = min(hw, cap)
    t = max(128, (t // 128) * 128)
    while hw % t != 0:
        t -= 128
    return t


def se_layer(x, w_fc1, w_fc2):
    """x: (B, C, H, W); w_fc1: (C//r, C); w_fc2: (C, C//r). Returns (B, C, H, W)."""
    b, c, h, w = x.shape
    hw = h * w
    itemsize = jnp.dtype(x.dtype).itemsize
    x_flat = x.reshape(b, c, hw)

    hw_tile = _pick_hw_tile(hw, c, itemsize)
    n_hw = hw // hw_tile
    tile_bytes = c * hw_tile * itemsize
    # double-buffered input + output tiles + gate + slack, clamped to 32 MiB.
    vmem_limit = int(min(max(8 * tile_bytes + (2 << 20), 4 << 20), 32 << 20))

    # ---- Pass 1: spatial sums (f32 accumulation), streamed over hw tiles ----
    sums = pl.pallas_call(
        _se_sum_kernel,
        out_shape=jax.ShapeDtypeStruct((b, 1, c), jnp.float32),
        grid=(b, n_hw),
        in_specs=[pl.BlockSpec((1, c, hw_tile), lambda bi, j: (bi, 0, j))],
        out_specs=pl.BlockSpec((1, 1, c), lambda bi, j: (bi, 0, 0)),
        compiler_params=pltpu.CompilerParams(
            dimension_semantics=("parallel", "arbitrary"),
            vmem_limit_bytes=vmem_limit,
        ),
        cost_estimate=pl.CostEstimate(
            flops=b * c * hw,
            transcendentals=0,
            bytes_accessed=b * c * hw * itemsize + b * c * 4,
        ),
    )(x_flat)

    # ---- Excitation (tiny matmuls) in plain JAX, f32 throughout -------------
    y = sums.reshape(b, c) * (1.0 / float(hw))                       # mean, (B, C)
    hmid = jnp.maximum(y @ w_fc1.astype(jnp.float32).T, 0.0)          # (B, Cr)
    gate = jax.nn.sigmoid(hmid @ w_fc2.astype(jnp.float32).T)         # (B, C) f32
    gate = gate.reshape(b, c, 1)

    # ---- Pass 2: broadcast-scale stream, native dtype, both axes parallel ---
    out_flat = pl.pallas_call(
        _se_scale_kernel,
        out_shape=jax.ShapeDtypeStruct((b, c, hw), x.dtype),
        grid=(b, n_hw),
        in_specs=[
            pl.BlockSpec((1, c, hw_tile), lambda bi, j: (bi, 0, j)),
            pl.BlockSpec((1, c, 1), lambda bi, j: (bi, 0, 0)),
        ],
        out_specs=pl.BlockSpec((1, c, hw_tile), lambda bi, j: (bi, 0, j)),
        compiler_params=pltpu.CompilerParams(
            dimension_semantics=("parallel", "parallel"),
            vmem_limit_bytes=vmem_limit,
        ),
        cost_estimate=pl.CostEstimate(
            flops=b * c * hw,
            transcendentals=0,
            bytes_accessed=2 * b * c * hw * itemsize + b * c * 4,
        ),
    )(x_flat, gate)

    return out_flat.reshape(b, c, h, w)


def se_layer_ref(x, w_fc1, w_fc2):
    """Pure-JAX reference mirroring the PyTorch forward."""
    y = jnp.mean(x.astype(jnp.float32), axis=(2, 3))             # (B, C)
    y = jnp.maximum(y @ w_fc1.T.astype(jnp.float32), 0.0)        # (B, Cr)
    y = jax.nn.sigmoid(y @ w_fc2.T.astype(jnp.float32))          # (B, C)
    return (x * y[:, :, None, None].astype(x.dtype)).astype(x.dtype)


if __name__ == "__main__":
    # Small shapes consistent with the module: channel=32, reduction=16 -> hidden=2.
    B, C, H, W = 2, 32, 16, 16
    reduction = 16
    Cr = C // reduction

    key = jax.random.PRNGKey(0)
    kx, k1, k2 = jax.random.split(key, 3)
    x = jax.random.normal(kx, (B, C, H, W), dtype=jnp.float32)
    # Deterministic synthetic weights (torch.nn.Linear weight shapes, no bias).
    w_fc1 = jax.random.normal(k1, (Cr, C), dtype=jnp.float32) * (1.0 / jnp.sqrt(C))
    w_fc2 = jax.random.normal(k2, (C, Cr), dtype=jnp.float32) * (1.0 / jnp.sqrt(Cr))

    out = se_layer(x, w_fc1, w_fc2)
    jax.block_until_ready(out)

    ref = se_layer_ref(x, w_fc1, w_fc2)
    assert out.shape == (B, C, H, W)
    assert jnp.allclose(out, ref, atol=1e-5, rtol=1e-5)

    print("KERNEL_OK")
</pallas_src>

<mosaic_0001>
module attributes {stable_mosaic.version = 11 : i64} {
  func.func @_se_sum_kernel(%arg0: i32, %arg1: i32, %arg2: memref<1x32x256xf32, #tpu.memory_space<vmem>>, %arg3: memref<1x1x32xf32, #tpu.memory_space<vmem>>) attributes {dimension_semantics = [#tpu.dimension_semantics<parallel>, #tpu.dimension_semantics<arbitrary>], iteration_bounds = array<i64: 2, 1>, scalar_prefetch = 0 : i64, scratch_operands = 0 : i64, tpu.core_type = #tpu.core_type<tc>, window_params = [{transform_indices = @transform_0, window_bounds = array<i64: 1, 32, 256>}, {transform_indices = @transform_1, window_bounds = array<i64: 1, 1, 32>}]} {
    %c0_i32 = arith.constant 0 : i32
    %0 = arith.cmpi eq, %arg1, %c0_i32 : i32
    %1 = arith.extui %0 : i1 to i32
    %c0_i32_0 = arith.constant 0 : i32
    %2 = arith.cmpi ne, %1, %c0_i32_0 : i32
    scf.if %2 {
      %cst_9 = arith.constant 0.000000e+00 : f32
      %9 = vector.broadcast %cst_9 : f32 to vector<1x1x32xf32>
      %c0_10 = arith.constant 0 : index
      %c0_11 = arith.constant 0 : index
      %c0_12 = arith.constant 0 : index
      %10 = vector.load %arg3[%c0_10, %c0_11, %c0_12] : memref<1x1x32xf32, #tpu.memory_space<vmem>>, vector<1x1x32xf32>
      tpu.vector_store %arg3[%c0_10, %c0_11, %c0_12], %9 {strides = array<i32>} : memref<1x1x32xf32, #tpu.memory_space<vmem>>, vector<1x1x32xf32>,
    } else {
    }
    %c0 = arith.constant 0 : index
    %c0_1 = arith.constant 0 : index
    %c0_2 = arith.constant 0 : index
    %3 = vector.load %arg2[%c0, %c0_1, %c0_2] : memref<1x32x256xf32, #tpu.memory_space<vmem>>, vector<1x32x256xf32>
    %cst = arith.constant dense<0.000000e+00> : vector<1x32xf32>
    %4 = vector.multi_reduction <add>, %3, %cst [2] : vector<1x32x256xf32> to vector<1x32xf32>
    %c0_3 = arith.constant 0 : index
    %c0_4 = arith.constant 0 : index
    %c0_5 = arith.constant 0 : index
    %5 = vector.load %arg3[%c0_3, %c0_4, %c0_5] : memref<1x1x32xf32, #tpu.memory_space<vmem>>, vector<1x1x32xf32>
    %6 = vector.shape_cast %4 : vector<1x32xf32> to vector<1x1x32xf32>
    %7 = arith.addf %5, %6 : vector<1x1x32xf32>
    %c0_6 = arith.constant 0 : index
    %c0_7 = arith.constant 0 : index
    %c0_8 = arith.constant 0 : index
    %8 = vector.load %arg3[%c0_6, %c0_7, %c0_8] : memref<1x1x32xf32, #tpu.memory_space<vmem>>, vector<1x1x32xf32>
    tpu.vector_store %arg3[%c0_6, %c0_7, %c0_8], %7 {strides = array<i32>} : memref<1x1x32xf32, #tpu.memory_space<vmem>>, vector<1x1x32xf32>,
    return
  }
  func.func @transform_0(%arg0: i32, %arg1: i32) -> (i32, i32, i32) {
    %c0_i32 = arith.constant 0 : i32
    %c0_i32_0 = arith.constant 0 : i32
    return %arg0, %c0_i32, %arg1 : i32, i32, i32
  }
  func.func @transform_1(%arg0: i32, %arg1: i32) -> (i32, i32, i32) {
    %c0_i32 = arith.constant 0 : i32
    %c0_i32_0 = arith.constant 0 : i32
    %c0_i32_1 = arith.constant 0 : i32
    return %arg0, %c0_i32, %c0_i32_0 : i32, i32, i32
  }
}

</mosaic_0001>

<llo_original>
// kernel: tpu_custom_call.1
$region0: #{tpu_custom_call.1}
  #allocation0 [shape = 'u32[]', space=smem, size = 0x4, offset = 0x4, fixed_abs, tag = 'smem constant byte address 0x4 - core index']
  #allocation1 [shape = 'u32[72,128]{1,0:T(1,128)}', space=vmem, size = 0x9000, scoped, tag = 'internal scratch']
  %s0 = inlined_call_operand.hbm [shape: f32[2,32,256], index: 0, kind: input, shape index: {}]
  %s1 = inlined_call_operand.hbm [shape: f32[2,1,32], index: 1, kind: output, shape index: {}]
  %s2 = sld [smem:[#allocation0]]
  $region45: #{tpu_custom_call.1} parent=0
    _
  %s4 = ssub.s32 1, %s2
  %s5 = scalar_select 0, %s4, %s2
  $region1: #{tpu_custom_call.1} parent=0
    #allocation2 [shape = 'u8[65536]{0}', space=vmem, size = 0x10000, scoped, tag = 'input window, operand 0']
    #allocation3 [shape = 's32[2]{0}', space=sflag, size = 0x8, scoped, tag = 'scoped memory for tpu_custom_call.1']
    #allocation4 [shape = 's32[2]{0}', space=sflag, size = 0x8, scoped, tag = 'scoped memory for tpu_custom_call.1']
    #allocation5 [shape = 'u8[1024]{0}', space=vmem, size = 0x400, scoped, tag = 'output window, operand 0']
    %6 = vsyncpa [#allocation3], 0
    %s7 = scalar_lea.sflag [#allocation3], 1
    %8 = vsyncpa %s7, 0
    %9 = vsyncpa [#allocation4], 0
    %s10 = scalar_lea.sflag [#allocation4], 1
    %11 = vsyncpa %s10, 0
    loop: start=0, step=1, limit=4
    $region2: #{tpu_custom_call.1} parent=1 // loop_pre_header
      _
    $region3: #{tpu_custom_call.1} parent=1 // loop_header
      %s13 = sphi 0, %s17
      %p14 = scmp.ge.s32.totalorder %s13, 4
      %s20 = sphi 0, %s32
      %s21 = sphi 0, %s28
      %s22 = sphi 0, %s20
      %s23 = sphi 0, %s21
      %s24 = sphi 0, %s22
      %s25 = sphi 0, %s23
      %s37 = sphi 0, %s39
      %s40 = sphi 0, %s37
      %s41 = sphi 0, %s40
      %s57 = sphi 0, %s41
      %s63 = sphi 0, %s65
      %s66 = sphi 0, %s63
      %s67 = sphi 0, %s66
      %s83 = sphi 0, %s67
    $region4: #{tpu_custom_call.1} parent=1 // loop_header_branch
      %16 = sbr.rel (%p14) target = $region8
    $region5: #{tpu_custom_call.1} parent=1 // loop_body
      %s18 = ssub.s32 %s13, 1
      %s19 = ssub.s32 %s13, 2
      %s26 = sadd.s32 1, %s21
      %p27 = scmp.ge.s32.totalorder %s26, 1
      %s28 = scalar_select %p27, 0, %s26
      %s29 = sadd.s32 1, %s20
      %s30 = scalar_select %p27, %s29, %s20
      %p31 = scmp.ge.s32.totalorder %s30, 2
      %s32 = scalar_select %p31, 0, %s30
      %s33 = ssub.s32 %s20, %s32
      %s34 = ssub.s32 %s21, %s28
      %s35 = sor.u32 %s33, %s34
      %p36 = scmp.eq.s32.totalorder %s35, 0
      %s38 = sadd.s32 %s37, 1
      %s39 = scalar_select %p36, %s37, %s38
      %p42 = pneg %p36
      %p43 = scmp.eq.s32.totalorder %s13, 1
      %p44 = por %p42, %p43
      %p45 = scmp.ne.s32.totalorder %s37, %s40
      %p46 = scmp.eq.s32.totalorder %s13, 0
      %p47 = por %p45, %p46
      %p48 = scmp.ne.s32.totalorder %s37, %s40
      %p49 = scmp.eq.s32.totalorder %s18, 1
      %p50 = por %p48, %p49
      %p51 = scmp.ne.s32.totalorder %s40, %s41
      %p52 = scmp.eq.s32.totalorder %s18, 0
      %p53 = por %p51, %p52
      %p54 = scmp.ne.s32.totalorder %s40, %s41
      %p55 = scmp.eq.s32.totalorder %s19, 1
      %p56 = por %p54, %p55
      %p58 = scmp.ne.s32.totalorder %s41, %s57
      %p59 = scmp.eq.s32.totalorder %s19, 0
      %p60 = por %p58, %p59
      %s61 = ssub.s32 %s20, %s32
      %p62 = scmp.eq.s32.totalorder %s61, 0
      %s64 = sadd.s32 %s63, 1
      %s65 = scalar_select %p62, %s63, %s64
      %p68 = pneg %p62
      %p69 = scmp.eq.s32.totalorder %s13, 1
      %p70 = por %p68, %p69
      %p71 = scmp.ne.s32.totalorder %s63, %s66
      %p72 = scmp.eq.s32.totalorder %s13, 0
      %p73 = por %p71, %p72
      %p74 = scmp.ne.s32.totalorder %s63, %s66
      %p75 = scmp.eq.s32.totalorder %s18, 1
      %p76 = por %p74, %p75
      %p77 = scmp.ne.s32.totalorder %s66, %s67
      %p78 = scmp.eq.s32.totalorder %s18, 0
      %p79 = por %p77, %p78
      %p80 = scmp.ne.s32.totalorder %s66, %s67
      %p81 = scmp.eq.s32.totalorder %s19, 1
      %p82 = por %p80, %p81
      %p84 = scmp.ne.s32.totalorder %s67, %s83
      %p85 = scmp.eq.s32.totalorder %s19, 0
      %p86 = por %p84, %p85
      %p87 = scmp.le.s32.totalorder 1, %s13
      %p88 = scmp.lt.s32.totalorder %s13, 3
      %p89 = pnand %p87, %p88
      %p90 = pneg %p89
      // Predicated region
      $region9: #{tpu_custom_call.1} parent=5 // pred_check
        _
      $region10: #{tpu_custom_call.1} parent=5 // pred_check_branch
        %92 = sbr.rel (%p89) target = $region12
      $region11: #{tpu_custom_call.1} parent=5 // pred_region
        %s93 = ssub.s32 %s13, 1
      $region12: #{tpu_custom_call.1} parent=5 // pred_fallthru
        _
      %p94 = scmp.lt.s32.totalorder %s13, 2
      // Predicated region
      $region13: #{tpu_custom_call.1} parent=5 // pred_check
        %p95 = pneg %p94
      $region14: #{tpu_custom_call.1} parent=5 // pred_check_branch
        %97 = sbr.rel (%p95) target = $region16
      $region15: #{tpu_custom_call.1} parent=5 // pred_region
        // Predicated region
        $region17: #{tpu_custom_call.1} parent=15 // pred_check
          %p98 = pneg %p47
        $region18: #{tpu_custom_call.1} parent=15 // pred_check_branch
          %100 = sbr.rel (%p98) target = $region20
        $region19: #{tpu_custom_call.1} parent=15 // pred_region
          %s101 = sand.u32 %s37, 1
          %s102 = scalar_lea.sflag [#allocation3], %s101
          %s103 = sand.u32 %s37, 1
          %s104 = smul.addr %s103, 64
          %s105 = scalar_lea.vmem [#allocation2], %s104
          %s106 = smul.u32 2, %s21
          %108 = vsyncadd %s102, 0
          %s109 = smul.addr %s20, 8
          %s110 = sadd.s32 %s106, %s109
          %s111 = smul.addr %s110, 8
          %s112 = scalar_lea.hbm %s0, %s111
          %s113 = sshll.u32 %s112, 4
          %s114 = int_to_ptr.hbm [resolvable:$true] %s113
          %s115 = sshll.u32 %s105, 4
          %s116 = int_to_ptr.vmem [resolvable:$true] %s115
          %121 = dma.hbm_to_vmem [thread:$0]  %s114, 1024, %s116, %s102, 256, 256, 16
        $region20: #{tpu_custom_call.1} parent=15 // pred_fallthru
          _
      $region16: #{tpu_custom_call.1} parent=5 // pred_fallthru
        _
      %p122 = scmp.le.s32.totalorder 1, %s13
      %p123 = scmp.lt.s32.totalorder %s13, 3
      %p124 = pnand %p122, %p123
      %p125 = pneg %p124
      // Predicated region
      $region21: #{tpu_custom_call.1} parent=5 // pred_check
        _
      $region22: #{tpu_custom_call.1} parent=5 // pred_check_branch
        %127 = sbr.rel (%p124) target = $region24
      $region23: #{tpu_custom_call.1} parent=5 // pred_region
        %s128 = ssub.s32 %s13, 1
        %s129 = sand.u32 %s40, 1
        %s130 = scalar_lea.sflag [#allocation3], %s129
        %s131 = sand.u32 %s40, 1
        %s132 = smul.addr %s131, 64
        %s133 = scalar_lea.vmem [#allocation2], %s132
        // Predicated region
        $region25: #{tpu_custom_call.1} parent=23 // pred_check
          %p134 = pneg %p53
        $region26: #{tpu_custom_call.1} parent=23 // pred_check_branch
          %136 = sbr.rel (%p134) target = $region28
        $region27: #{tpu_custom_call.1} parent=23 // pred_region
          %138 = dma.done %s130, 1024
        $region28: #{tpu_custom_call.1} parent=23 // pred_fallthru
          _
        %s139 = sand.u32 %s40, 1
        %s140 = scalar_lea.sflag [#allocation3], %s139
        %s141 = sand.u32 %s40, 1
        %s142 = smul.addr %s141, 64
        %s143 = scalar_lea.vmem [#allocation2], %s142
        %p144 = pneg %p53
        %p145 = pneg %p50
        %p146 = pneg %p79
        %p147 = pneg %p76
        %s148 = sand.u32 %s66, 1
        %s149 = scalar_lea.sflag [#allocation4], %s148
        %s150 = sand.u32 %s66, 1
        %s151 = scalar_lea.vmem [#allocation5], %s150
        %s152 = smul.u32 2, %s23
        %p153 = scmp.eq.s32.totalorder %s23, 0
        // Predicated region
        $region29: #{tpu_custom_call.1} parent=23 // pred_check
          %p154 = pneg %p153
        $region30: #{tpu_custom_call.1} parent=23 // pred_check_branch
          %156 = sbr.rel (%p154) target = $region32
        $region31: #{tpu_custom_call.1} parent=23 // pred_region
          %vm157 = vcmask 253952
          %158 = vst.msk [vmem:[%s151] sm:$0x1] %vm157, 0.0
        $region32: #{tpu_custom_call.1} parent=23 // pred_fallthru
          _
        %v159 = vld [vmem:[%s133] sm:$0xff]
        %v160 = vld [vmem:[%s133 + $0x8] sm:$0xff]
        %v161 = vld [vmem:[%s133 + $0x10] sm:$0xff]
        %v162 = vld [vmem:[%s133 + $0x18] sm:$0xff]
        %v163 = vld [vmem:[%s133 + $0x20] sm:$0xff]
        %v164 = vld [vmem:[%s133 + $0x28] sm:$0xff]
        %v165 = vld [vmem:[%s133 + $0x30] sm:$0xff]
        %v166 = vld [vmem:[%s133 + $0x38] sm:$0xff]
        %v167 = vadd.f32 %v159, %v160
        %168 = vadd.xlane.f32.xlu0 %v167
        %v169 = vpop.xlane.xlu0 %168
        %v170 = vadd.f32 %v161, %v162
        %171 = vadd.xlane.f32.xlu0 %v170
        %v172 = vpop.xlane.xlu0 %171
        %v173 = vadd.f32 %v163, %v164
        %174 = vadd.xlane.f32.xlu0 %v173
        %v175 = vpop.xlane.xlu0 %174
        %v176 = vadd.f32 %v165, %v166
        %177 = vadd.xlane.f32.xlu0 %v176
        %v178 = vpop.xlane.xlu0 %177
        %v179 = vld [vmem:[%s151] sm:$0x1]
        %v184 = vperm.slane %v169, 0
        %v185 = vperm.slane %v169, 1
        %v186 = vperm.slane %v169, 2
        %v187 = vperm.slane %v169, 3
        %v188 = vperm.slane %v169, 4
        %v189 = vperm.slane %v169, 5
        %v190 = vperm.slane %v169, 6
        %v191 = vperm.slane %v169, 7
        %v192 = vperm.slane %v172, 0
        %v193 = vperm.slane %v172, 1
        %v194 = vperm.slane %v172, 2
        %v195 = vperm.slane %v172, 3
        %v196 = vperm.slane %v172, 4
        %v197 = vperm.slane %v172, 5
        %v198 = vperm.slane %v172, 6
        %v199 = vperm.slane %v172, 7
        %v200 = vperm.slane %v175, 0
        %v201 = vperm.slane %v175, 1
        %v202 = vperm.slane %v175, 2
        %v203 = vperm.slane %v175, 3
        %v204 = vperm.slane %v175, 4
        %v205 = vperm.slane %v175, 5
        %v206 = vperm.slane %v175, 6
        %v207 = vperm.slane %v175, 7
        %v208 = vperm.slane %v178, 0
        %v209 = vperm.slane %v178, 1
        %v210 = vperm.slane %v178, 2
        %v211 = vperm.slane %v178, 3
        %v212 = vperm.slane %v178, 4
        %v213 = vperm.slane %v178, 5
        %v214 = vperm.slane %v178, 6
        %v215 = vperm.slane %v178, 7
        %216 = vst [vmem:[#allocation1] ss:$9 sm:$0xff] %v184
        %s217 = scalar_lea.vmem [#allocation1], 1
        %218 = vst [vmem:[%s217] ss:$9 sm:$0xff] %v185
        %s219 = scalar_lea.vmem [#allocation1], 2
        %220 = vst [vmem:[%s219] ss:$9 sm:$0xff] %v186
        %s221 = scalar_lea.vmem [#allocation1], 3
        %222 = vst [vmem:[%s221] ss:$9 sm:$0xff] %v187
        %s223 = scalar_lea.vmem [#allocation1], 4
        %224 = vst [vmem:[%s223] ss:$9 sm:$0xff] %v188
        %s225 = scalar_lea.vmem [#allocation1], 5
        %226 = vst [vmem:[%s225] ss:$9 sm:$0xff] %v189
        %s227 = scalar_lea.vmem [#allocation1], 6
        %228 = vst [vmem:[%s227] ss:$9 sm:$0xff] %v190
        %s229 = scalar_lea.vmem [#allocation1], 7
        %230 = vst [vmem:[%s229] ss:$9 sm:$0xff] %v191
        %v231 = vld [vmem:[#allocation1] sm:$0xff]
        %232 = vst [vmem:[#allocation1] ss:$9 sm:$0xff] %v192
        %233 = vst [vmem:[%s217] ss:$9 sm:$0xff] %v193
        %234 = vst [vmem:[%s219] ss:$9 sm:$0xff] %v194
        %235 = vst [vmem:[%s221] ss:$9 sm:$0xff] %v195
        %236 = vst [vmem:[%s223] ss:$9 sm:$0xff] %v196
        %237 = vst [vmem:[%s225] ss:$9 sm:$0xff] %v197
        %238 = vst [vmem:[%s227] ss:$9 sm:$0xff] %v198
        %239 = vst [vmem:[%s229] ss:$9 sm:$0xff] %v199
        %v240 = vld [vmem:[#allocation1] sm:$0xff]
        %241 = vst [vmem:[#allocation1] ss:$9 sm:$0xff] %v200
        %242 = vst [vmem:[%s217] ss:$9 sm:$0xff] %v201
        %243 = vst [vmem:[%s219] ss:$9 sm:$0xff] %v202
        %244 = vst [vmem:[%s221] ss:$9 sm:$0xff] %v203
        %245 = vst [vmem:[%s223] ss:$9 sm:$0xff] %v204
        %246 = vst [vmem:[%s225] ss:$9 sm:$0xff] %v205
        %247 = vst [vmem:[%s227] ss:$9 sm:$0xff] %v206
        %248 = vst [vmem:[%s229] ss:$9 sm:$0xff] %v207
        %v249 = vld [vmem:[#allocation1] sm:$0xff]
        %250 = vst [vmem:[#allocation1] ss:$9 sm:$0xff] %v208
        %251 = vst [vmem:[%s217] ss:$9 sm:$0xff] %v209
        %252 = vst [vmem:[%s219] ss:$9 sm:$0xff] %v210
        %253 = vst [vmem:[%s221] ss:$9 sm:$0xff] %v211
        %254 = vst [vmem:[%s223] ss:$9 sm:$0xff] %v212
        %255 = vst [vmem:[%s225] ss:$9 sm:$0xff] %v213
        %256 = vst [vmem:[%s227] ss:$9 sm:$0xff] %v214
        %257 = vst [vmem:[%s229] ss:$9 sm:$0xff] %v215
        %v258 = vld [vmem:[#allocation1] sm:$0xff]
        %259 = vset.pattern.permute.xlu0 0
        %260 = vperm.xlu0 %259, %v231
        %v261 = vpop.permute.xlu0 %260
        %262 = vset.pattern.permute.xlu0 0
        %263 = vperm.xlu0 %262, %v240
        %v264 = vpop.permute.xlu0 %263
        %265 = vset.pattern.permute.xlu0 0
        %266 = vperm.xlu0 %265, %v249
        %v267 = vpop.permute.xlu0 %266
        %268 = vset.pattern.permute.xlu0 0
        %269 = vperm.xlu0 %268, %v258
        %v270 = vpop.permute.xlu0 %269
        %v271 = vlaneseq
        %v272 = vand.u32 %v271, 127
        %v273 = vperm.slane %v261, %v272
        %v274 = vadd.s32 %v272, 4294967288
        %v275 = vperm.slane %v264, %v274
        %vm276 = vcmask 130112
        %v277 = vsel %vm276, %v275, %v273
        %v278 = vadd.s32 %v272, 4294967280
        %v279 = vperm.slane %v267, %v278
        %vm280 = vcmask 195712
        %v281 = vsel %vm280, %v279, %v277
        %v282 = vadd.s32 %v272, 4294967272
        %v283 = vperm.slane %v270, %v282
        %vm284 = vcmask 261312
        %v285 = vsel %vm284, %v283, %v281
        %v287 = vadd.f32 %v179, %v285
        %vm288 = vcmask 253952
        %289 = vst.msk [vmem:[%s151] sm:$0x1] %vm288, %v287
        %s290 = sand.u32 %s66, 1
        %s291 = scalar_lea.sflag [#allocation4], %s290
        %s292 = sand.u32 %s66, 1
        %s293 = scalar_lea.vmem [#allocation5], %s292
        // Predicated region
        $region33: #{tpu_custom_call.1} parent=23 // pred_check
          %p294 = pneg %p76
        $region34: #{tpu_custom_call.1} parent=23 // pred_check_branch
          %296 = sbr.rel (%p294) target = $region36
        $region35: #{tpu_custom_call.1} parent=23 // pred_region
          %298 = vsyncadd %s291, 0
          %s299 = scalar_lea.hbm %s1, %s22
          %s301 = sshll.u32 %s293, 4
          %s302 = int_to_ptr.vmem [resolvable:$true] %s301
          %s303 = sshll.u32 %s299, 4
          %s304 = int_to_ptr.hbm [resolvable:$true] %s303
          %306 = dma.vmem_to_hbm [thread:$0]  %s302, 16, %s304, %s291
        $region36: #{tpu_custom_call.1} parent=23 // pred_fallthru
          _
      $region24: #{tpu_custom_call.1} parent=5 // pred_fallthru
        _
      %p307 = scmp.le.s32.totalorder 2, %s13
      // Predicated region
      $region37: #{tpu_custom_call.1} parent=5 // pred_check
        %p308 = pneg %p307
      $region38: #{tpu_custom_call.1} parent=5 // pred_check_branch
        %310 = sbr.rel (%p308) target = $region40
      $region39: #{tpu_custom_call.1} parent=5 // pred_region
        %s311 = ssub.s32 %s13, 2
        // Predicated region
        $region41: #{tpu_custom_call.1} parent=39 // pred_check
          %p312 = pneg %p82
        $region42: #{tpu_custom_call.1} parent=39 // pred_check_branch
          %314 = sbr.rel (%p312) target = $region44
        $region43: #{tpu_custom_call.1} parent=39 // pred_region
          %s315 = sand.u32 %s67, 1
          %s316 = scalar_lea.sflag [#allocation4], %s315
          %s317 = sand.u32 %s67, 1
          %s318 = scalar_lea.vmem [#allocation5], %s317
          %320 = dma.done %s316, 16
        $region44: #{tpu_custom_call.1} parent=39 // pred_fallthru
          _
      $region40: #{tpu_custom_call.1} parent=5 // pred_fallthru
        _
    $region6: #{tpu_custom_call.1} parent=1 // loop_footer
      %s17 = sadd.s32 1, %s13
    $region7: #{tpu_custom_call.1} parent=1 // loop_footer_branch
      %12 = sbr.rel target = $region3
    $region8: #{tpu_custom_call.1} parent=1 // loop_exit
      _
    %321 = vsyncpa [#allocation3], 1
    %s322 = scalar_lea.sflag [#allocation3], 1
    %323 = vsyncpa %s322, 1
    %324 = vsyncpa [#allocation4], 1
    %s325 = scalar_lea.sflag [#allocation4], 1
    %326 = vsyncpa %s325, 1

</llo_original>
